<compile_context>
chip_gen: v6e
topology: v6e:2x2x1
jax: 0.10.0
libtpu: 0.0.40
codegen_flags: <defaults>
</compile_context>

<pallas_src>
import functools

import jax
import jax.numpy as jnp
from jax.experimental import pallas as pl
from jax.experimental.pallas import tpu as pltpu

_LANES = 128
_VMEM_LIMIT = 48 * 1024 * 1024  # fits v7x (64 MiB phys), plenty on v5e/v6e


def _round_up(a, b):
    return (a + b - 1) // b * b


# --------------------------------------------------------------------------
# Kernel 1: degree vector  d = rsqrt(adj.sum(1) + 1)
# --------------------------------------------------------------------------
def _degree_kernel(adj_ref, d_ref, acc_ref):
    k = pl.program_id(1)

    @pl.when(k == 0)
    def _():
        acc_ref[...] = jnp.zeros_like(acc_ref)

    # adj tile is bf16 (0/1 exact); reduce in f32.
    acc_ref[...] += jnp.sum(
        adj_ref[...].astype(jnp.float32), axis=1, keepdims=True
    )

    @pl.when(k == pl.num_programs(1) - 1)
    def _():
        # +1.0 accounts for the self loop (tilde_A = A + I); guarantees > 0.
        d_ref[...] = jax.lax.rsqrt(acc_ref[...] + 1.0)


def _degree(adj, bm, bk):
    n = adj.shape[0]
    return pl.pallas_call(
        _degree_kernel,
        out_shape=jax.ShapeDtypeStruct((n, 1), jnp.float32),
        grid_spec=pltpu.PrefetchScalarGridSpec(
            num_scalar_prefetch=0,
            grid=(n // bm, n // bk),
            in_specs=[pl.BlockSpec((bm, bk), lambda i, k: (i, k))],
            out_specs=pl.BlockSpec((bm, 1), lambda i, k: (i, 0)),
            scratch_shapes=[pltpu.VMEM((bm, 1), jnp.float32)],
        ),
        compiler_params=pltpu.CompilerParams(
            dimension_semantics=("parallel", "arbitrary"),
            vmem_limit_bytes=_VMEM_LIMIT,
        ),
    )(adj)


# --------------------------------------------------------------------------
# Kernel 2: per-node projection + pre-scaling   s = d * (y @ W)   (bf16 out)
# --------------------------------------------------------------------------
def _transform_kernel(y_ref, w_ref, d_ref, s_ref):
    yb = y_ref[...].astype(jnp.bfloat16)
    z = jnp.dot(yb, w_ref[...], preferred_element_type=jnp.float32)
    s_ref[...] = (d_ref[...] * z).astype(s_ref.dtype)


def _transform(y, w_pad, d, bm):
    n, c = y.shape
    c_out = w_pad.shape[1]
    return pl.pallas_call(
        _transform_kernel,
        out_shape=jax.ShapeDtypeStruct((n, c_out), jnp.bfloat16),
        grid_spec=pltpu.PrefetchScalarGridSpec(
            num_scalar_prefetch=0,
            grid=(n // bm,),
            in_specs=[
                pl.BlockSpec((bm, c), lambda i: (i, 0)),
                pl.BlockSpec((c, c_out), lambda i: (0, 0)),
                pl.BlockSpec((bm, 1), lambda i: (i, 0)),
            ],
            out_specs=pl.BlockSpec((bm, c_out), lambda i: (i, 0)),
        ),
        compiler_params=pltpu.CompilerParams(
            dimension_semantics=("parallel",),
            vmem_limit_bytes=_VMEM_LIMIT,
        ),
    )(y, w_pad, d)


# --------------------------------------------------------------------------
# Kernel 3: normalized aggregation   out = d * (adj @ s + s)   [+ ReLU]
#           (== hatA @ (y @ W) without ever materializing hatA)
# --------------------------------------------------------------------------
def _make_aggregate_kernel(apply_relu):
    def kernel(adj_ref, s_col_ref, s_row_ref, d_ref, out_ref, acc_ref):
        k = pl.program_id(1)

        @pl.when(k == 0)
        def _():
            acc_ref[...] = jnp.zeros_like(acc_ref)

        acc_ref[...] += jnp.dot(
            adj_ref[...], s_col_ref[...], preferred_element_type=jnp.float32
        )

        @pl.when(k == pl.num_programs(1) - 1)
        def _():
            res = d_ref[...] * (acc_ref[...] + s_row_ref[...].astype(jnp.float32))
            if apply_relu:
                res = jnp.maximum(res, 0.0)
            out_ref[...] = res.astype(out_ref.dtype)

    return kernel


def _aggregate(adj, s, d, bm, bk, *, relu):
    n = adj.shape[0]
    c = s.shape[1]
    return pl.pallas_call(
        _make_aggregate_kernel(relu),
        out_shape=jax.ShapeDtypeStruct((n, c), jnp.float32),
        grid_spec=pltpu.PrefetchScalarGridSpec(
            num_scalar_prefetch=0,
            grid=(n // bm, n // bk),
            in_specs=[
                pl.BlockSpec((bm, bk), lambda i, k: (i, k)),  # adj tile
                pl.BlockSpec((bk, c), lambda i, k: (k, 0)),   # neighbor rows of s
                pl.BlockSpec((bm, c), lambda i, k: (i, 0)),   # self rows of s
                pl.BlockSpec((bm, 1), lambda i, k: (i, 0)),   # row degrees
            ],
            out_specs=pl.BlockSpec((bm, c), lambda i, k: (i, 0)),
            scratch_shapes=[pltpu.VMEM((bm, c), jnp.float32)],
        ),
        compiler_params=pltpu.CompilerParams(
            dimension_semantics=("parallel", "arbitrary"),
            vmem_limit_bytes=_VMEM_LIMIT,
        ),
    )(adj, s, s, d)


# --------------------------------------------------------------------------
# Wrapper: GCN.forward(x, adj, normalized=False), num_layer=2, eval mode
# --------------------------------------------------------------------------
def gcn_forward(x, adj, W, *, block_m=128, block_k=128):
    """Returns (out, W, representation), mirroring the PyTorch module."""
    assert x.ndim == 2 and adj.ndim == 2
    w0, w1 = W
    n, f = x.shape
    h = w0.shape[1]
    o = w1.shape[1]

    h_pad = _round_up(h, _LANES)
    o_pad = _round_up(o, _LANES)
    n_pad = _round_up(n, max(block_m, block_k))
    assert n_pad % block_m == 0 and n_pad % block_k == 0

    # Pad node dim to the tile size and H/O to lane width (zeros are inert:
    # padded nodes have no edges; padded weight columns/rows are zero).
    x_p = jnp.zeros((n_pad, f), jnp.float32).at[:n, :].set(x.astype(jnp.float32))
    adj_p = (
        jnp.zeros((n_pad, n_pad), jnp.bfloat16)
        .at[:n, :n]
        .set(adj.astype(jnp.bfloat16))  # 0/1 entries -> exact in bf16
    )
    w0_p = jnp.zeros((f, h_pad), jnp.bfloat16).at[:, :h].set(w0.astype(jnp.bfloat16))
    w1_p = jnp.zeros((h_pad, o_pad), jnp.bfloat16).at[:h, :o].set(
        w1.astype(jnp.bfloat16)
    )

    # Degree normalization vector (one sweep over adj).
    d = _degree(adj_p, block_m, block_k)                       # (n_pad, 1) f32

    # Layer 0: rep = relu(hatA @ x @ W0) == relu(d * (A @ s0 + s0)), s0 = d*(x@W0)
    s0 = _transform(x_p, w0_p, d, block_m)                     # (n_pad, h_pad) bf16
    rep = _aggregate(adj_p, s0, d, block_m, block_k, relu=True)  # (n_pad, h_pad) f32

    # Layer 1 (output, no ReLU): out = hatA @ rep @ W1
    s1 = _transform(rep, w1_p, d, block_m)                     # (n_pad, o_pad) bf16
    out = _aggregate(adj_p, s1, d, block_m, block_k, relu=False)

    return out[:n, :o], W, rep[:n, :h]


# --------------------------------------------------------------------------
# Reference + demo
# --------------------------------------------------------------------------
def _xavier_uniform(key, fan_in, fan_out):
    limit = jnp.sqrt(6.0 / (fan_in + fan_out))
    return jax.random.uniform(
        key, (fan_in, fan_out), dtype=jnp.float32, minval=-limit, maxval=limit
    )


def _reference(x, adj, W):
    """Plain-JAX f32 reference of the PyTorch forward."""
    n = adj.shape[0]
    tilde_a = adj + jnp.eye(n, dtype=adj.dtype)
    d = 1.0 / jnp.sqrt(tilde_a.sum(1))
    hat_a = (d[:, None] * tilde_a) * d[None, :]
    rep = jax.nn.relu(hat_a @ x @ W[0])
    out = hat_a @ rep @ W[1]
    return out, rep


if __name__ == "__main__":
    # N nodes, feature dim F, hidden_dim=16 (module default), out_dim=8.
    N, F_DIM, HIDDEN, OUT_DIM = 256, 64, 16, 8

    key = jax.random.PRNGKey(0)
    kx, kadj, kw0, kw1 = jax.random.split(key, 4)

    x = jax.random.normal(kx, (N, F_DIM), dtype=jnp.float32)
    # Symmetric 0/1 adjacency, no self loops (self-loop added in-kernel).
    a_raw = (jax.random.uniform(kadj, (N, N)) > 0.9).astype(jnp.float32)
    adj = jnp.maximum(a_raw, a_raw.T) * (1.0 - jnp.eye(N, dtype=jnp.float32))

    # Deterministic xavier_uniform init (GCN.init_weight()).
    W = [
        _xavier_uniform(kw0, F_DIM, HIDDEN),
        _xavier_uniform(kw1, HIDDEN, OUT_DIM),
    ]

    out, W_out, rep = gcn_forward(x, adj, W)
    jax.block_until_ready((out, rep))

    ref_out, ref_rep = _reference(x, adj, W)
    assert out.shape == (N, OUT_DIM) and rep.shape == (N, HIDDEN)
    # bf16 MXU inputs -> compare against the f32 reference with loose tolerance.
    assert jnp.allclose(rep, ref_rep, atol=3e-2, rtol=3e-2)
    assert jnp.allclose(out, ref_out, atol=3e-2, rtol=3e-2)

    print("KERNEL_OK")
</pallas_src>

<mosaic_0001>
module attributes {stable_mosaic.version = 11 : i64} {
  func.func @_degree_kernel(%arg0: i32, %arg1: i32, %arg2: memref<128x128xbf16, #tpu.memory_space<vmem>>, %arg3: memref<128x1xf32, #tpu.memory_space<vmem>>, %arg4: memref<128x1xf32, #tpu.memory_space<vmem>>) attributes {dimension_semantics = [#tpu.dimension_semantics<parallel>, #tpu.dimension_semantics<arbitrary>], iteration_bounds = array<i64: 2, 2>, scalar_prefetch = 0 : i64, scratch_operands = 1 : i64, tpu.core_type = #tpu.core_type<tc>, window_params = [{transform_indices = @transform_0, window_bounds = array<i64: 128, 128>}, {transform_indices = @transform_1, window_bounds = array<i64: 128, 1>}]} {
    %c0_i32 = arith.constant 0 : i32
    %0 = arith.cmpi eq, %arg1, %c0_i32 : i32
    %1 = arith.extui %0 : i1 to i32
    %c0_i32_0 = arith.constant 0 : i32
    %2 = arith.cmpi ne, %1, %c0_i32_0 : i32
    scf.if %2 {
      %cst_7 = arith.constant 0.000000e+00 : f32
      %13 = vector.broadcast %cst_7 : f32 to vector<128x1xf32>
      %c0_8 = arith.constant 0 : index
      %c0_9 = arith.constant 0 : index
      %14 = vector.load %arg4[%c0_8, %c0_9] : memref<128x1xf32, #tpu.memory_space<vmem>>, vector<128x1xf32>
      tpu.vector_store %arg4[%c0_8, %c0_9], %13 {strides = array<i32>} : memref<128x1xf32, #tpu.memory_space<vmem>>, vector<128x1xf32>,
    } else {
    }
    %c0 = arith.constant 0 : index
    %c0_1 = arith.constant 0 : index
    %3 = vector.load %arg4[%c0, %c0_1] : memref<128x1xf32, #tpu.memory_space<vmem>>, vector<128x1xf32>
    %c0_2 = arith.constant 0 : index
    %c0_3 = arith.constant 0 : index
    %4 = vector.load %arg2[%c0_2, %c0_3] : memref<128x128xbf16, #tpu.memory_space<vmem>>, vector<128x128xbf16>
    %5 = arith.extf %4 : vector<128x128xbf16> to vector<128x128xf32>
    %cst = arith.constant dense<0.000000e+00> : vector<128xf32>
    %6 = vector.multi_reduction <add>, %5, %cst [1] : vector<128x128xf32> to vector<128xf32>
    %7 = vector.shape_cast %6 : vector<128xf32> to vector<128x1xf32>
    %8 = arith.addf %3, %7 : vector<128x1xf32>
    %c0_4 = arith.constant 0 : index
    %c0_5 = arith.constant 0 : index
    %9 = vector.load %arg4[%c0_4, %c0_5] : memref<128x1xf32, #tpu.memory_space<vmem>>, vector<128x1xf32>
    tpu.vector_store %arg4[%c0_4, %c0_5], %8 {strides = array<i32>} : memref<128x1xf32, #tpu.memory_space<vmem>>, vector<128x1xf32>,
    %c1_i32 = arith.constant 1 : i32
    %10 = arith.cmpi eq, %arg1, %c1_i32 : i32
    %11 = arith.extui %10 : i1 to i32
    %c0_i32_6 = arith.constant 0 : i32
    %12 = arith.cmpi ne, %11, %c0_i32_6 : i32
    scf.if %12 {
      %c0_7 = arith.constant 0 : index
      %c0_8 = arith.constant 0 : index
      %13 = vector.load %arg4[%c0_7, %c0_8] : memref<128x1xf32, #tpu.memory_space<vmem>>, vector<128x1xf32>
      %cst_9 = arith.constant 1.000000e+00 : f32
      %14 = vector.broadcast %cst_9 : f32 to vector<128x1xf32>
      %15 = arith.addf %13, %14 : vector<128x1xf32>
      %16 = math.rsqrt %15 : vector<128x1xf32>
      %c0_10 = arith.constant 0 : index
      %c0_11 = arith.constant 0 : index
      %17 = vector.load %arg3[%c0_10, %c0_11] : memref<128x1xf32, #tpu.memory_space<vmem>>, vector<128x1xf32>
      tpu.vector_store %arg3[%c0_10, %c0_11], %16 {strides = array<i32>} : memref<128x1xf32, #tpu.memory_space<vmem>>, vector<128x1xf32>,
    } else {
    }
    return
  }
  func.func @transform_0(%arg0: i32, %arg1: i32) -> (i32, i32) {
    %c0_i32 = arith.constant 0 : i32
    return %arg0, %arg1 : i32, i32
  }
  func.func @transform_1(%arg0: i32, %arg1: i32) -> (i32, i32) {
    %c0_i32 = arith.constant 0 : i32
    %c0_i32_0 = arith.constant 0 : i32
    return %arg0, %c0_i32 : i32, i32
  }
}

</mosaic_0001>

<llo_original>
// kernel: tpu_custom_call.1
$region0: #{tpu_custom_call.1}
  #allocation0 [shape = 'u32[]', space=smem, size = 0x4, offset = 0x4, fixed_abs, tag = 'smem constant byte address 0x4 - core index']
  #allocation1 [shape = 'u32[144,128]{1,0:T(1,128)}', space=vmem, size = 0x12000, scoped, tag = 'internal scratch']
  #allocation2 [shape = 'f32[128,1]{1,0:T(8,128)}', space=vmem, size = 0x10000, scoped, tag = 'scratch operand']
  %s0 = inlined_call_operand.hbm [shape: bf16[256,256], index: 0, kind: input, shape index: {}]
  %s1 = inlined_call_operand.vmem [shape: f32[256,1], index: 1, kind: output, shape index: {}]
  %s2 = sld [smem:[#allocation0]]
  $region49: #{tpu_custom_call.1} parent=0
    _
  %s4 = ssub.s32 1, %s2
  %s5 = scalar_select 0, %s4, %s2
  $region1: #{tpu_custom_call.1} parent=0
    #allocation3 [shape = 'u8[65536]{0}', space=vmem, size = 0x10000, scoped, tag = 'input window, operand 0']
    #allocation4 [shape = 's32[2]{0}', space=sflag, size = 0x8, scoped, tag = 'scoped memory for tpu_custom_call.1']
    %6 = vsyncpa [#allocation4], 0
    %s7 = scalar_lea.sflag [#allocation4], 1
    %8 = vsyncpa %s7, 0
    loop: start=0, step=1, limit=6
    $region2: #{tpu_custom_call.1} parent=1 // loop_pre_header
      _
    $region3: #{tpu_custom_call.1} parent=1 // loop_header
      %s10 = sphi 0, %s14
      %p11 = scmp.ge.s32.totalorder %s10, 6
      %s17 = sphi 0, %s29
      %s18 = sphi 0, %s25
      %s19 = sphi 0, %s17
      %s20 = sphi 0, %s18
      %s21 = sphi 0, %s19
      %s22 = sphi 0, %s20
      %s34 = sphi 0, %s36
      %s37 = sphi 0, %s34
      %s38 = sphi 0, %s37
      %s54 = sphi 0, %s38
      %s60 = sphi 0, %s62
      %s63 = sphi 0, %s60
      %s64 = sphi 0, %s63
      %s80 = sphi 0, %s64
    $region4: #{tpu_custom_call.1} parent=1 // loop_header_branch
      %13 = sbr.rel (%p11) target = $region8
    $region5: #{tpu_custom_call.1} parent=1 // loop_body
      %s15 = ssub.s32 %s10, 1
      %s16 = ssub.s32 %s10, 2
      %s23 = sadd.s32 1, %s18
      %p24 = scmp.ge.s32.totalorder %s23, 2
      %s25 = scalar_select %p24, 0, %s23
      %s26 = sadd.s32 1, %s17
      %s27 = scalar_select %p24, %s26, %s17
      %p28 = scmp.ge.s32.totalorder %s27, 2
      %s29 = scalar_select %p28, 0, %s27
      %s30 = ssub.s32 %s17, %s29
      %s31 = ssub.s32 %s18, %s25
      %s32 = sor.u32 %s30, %s31
      %p33 = scmp.eq.s32.totalorder %s32, 0
      %s35 = sadd.s32 %s34, 1
      %s36 = scalar_select %p33, %s34, %s35
      %p39 = pneg %p33
      %p40 = scmp.eq.s32.totalorder %s10, 3
      %p41 = por %p39, %p40
      %p42 = scmp.ne.s32.totalorder %s34, %s37
      %p43 = scmp.eq.s32.totalorder %s10, 0
      %p44 = por %p42, %p43
      %p45 = scmp.ne.s32.totalorder %s34, %s37
      %p46 = scmp.eq.s32.totalorder %s15, 3
      %p47 = por %p45, %p46
      %p48 = scmp.ne.s32.totalorder %s37, %s38
      %p49 = scmp.eq.s32.totalorder %s15, 0
      %p50 = por %p48, %p49
      %p51 = scmp.ne.s32.totalorder %s37, %s38
      %p52 = scmp.eq.s32.totalorder %s16, 3
      %p53 = por %p51, %p52
      %p55 = scmp.ne.s32.totalorder %s38, %s54
      %p56 = scmp.eq.s32.totalorder %s16, 0
      %p57 = por %p55, %p56
      %s58 = ssub.s32 %s17, %s29
      %p59 = scmp.eq.s32.totalorder %s58, 0
      %s61 = sadd.s32 %s60, 1
      %s62 = scalar_select %p59, %s60, %s61
      %p65 = pneg %p59
      %p66 = scmp.eq.s32.totalorder %s10, 3
      %p67 = por %p65, %p66
      %p68 = scmp.ne.s32.totalorder %s60, %s63
      %p69 = scmp.eq.s32.totalorder %s10, 0
      %p70 = por %p68, %p69
      %p71 = scmp.ne.s32.totalorder %s60, %s63
      %p72 = scmp.eq.s32.totalorder %s15, 3
      %p73 = por %p71, %p72
      %p74 = scmp.ne.s32.totalorder %s63, %s64
      %p75 = scmp.eq.s32.totalorder %s15, 0
      %p76 = por %p74, %p75
      %p77 = scmp.ne.s32.totalorder %s63, %s64
      %p78 = scmp.eq.s32.totalorder %s16, 3
      %p79 = por %p77, %p78
      %p81 = scmp.ne.s32.totalorder %s64, %s80
      %p82 = scmp.eq.s32.totalorder %s16, 0
      %p83 = por %p81, %p82
      %p84 = scmp.le.s32.totalorder 1, %s10
      %p85 = scmp.lt.s32.totalorder %s10, 5
      %p86 = pnand %p84, %p85
      %p87 = pneg %p86
      // Predicated region
      $region9: #{tpu_custom_call.1} parent=5 // pred_check
        _
      $region10: #{tpu_custom_call.1} parent=5 // pred_check_branch
        %89 = sbr.rel (%p86) target = $region12
      $region11: #{tpu_custom_call.1} parent=5 // pred_region
        %s90 = ssub.s32 %s10, 1
      $region12: #{tpu_custom_call.1} parent=5 // pred_fallthru
        _
      %p91 = scmp.lt.s32.totalorder %s10, 4
      // Predicated region
      $region13: #{tpu_custom_call.1} parent=5 // pred_check
        %p92 = pneg %p91
      $region14: #{tpu_custom_call.1} parent=5 // pred_check_branch
        %94 = sbr.rel (%p92) target = $region16
      $region15: #{tpu_custom_call.1} parent=5 // pred_region
        // Predicated region
        $region17: #{tpu_custom_call.1} parent=15 // pred_check
          %p95 = pneg %p44
        $region18: #{tpu_custom_call.1} parent=15 // pred_check_branch
          %97 = sbr.rel (%p95) target = $region20
        $region19: #{tpu_custom_call.1} parent=15 // pred_region
          %s98 = sand.u32 %s34, 1
          %s99 = scalar_lea.sflag [#allocation4], %s98
          %s100 = sand.u32 %s34, 1
          %s101 = smul.addr %s100, 64
          %s102 = scalar_lea.vmem [#allocation3], %s101
          %s103 = smul.u32 16, %s17
          %s105 = ssub.s32 1024, 1024
          %106 = vsyncadd %s99, %s105
          %s107 = smul.addr %s103, 2
          %s108 = sadd.s32 %s18, %s107
          %s109 = smul.addr %s108, 64
          %s110 = scalar_lea.hbm %s0, %s109
          %s111 = sshll.u32 %s102, 4
          %s112 = int_to_ptr.vmem [resolvable:$true] %s111
          %117 = dma.hbm_to_vmem [thread:$0]  %s110, 1024, %s112, %s99, 128, 64, 4
        $region20: #{tpu_custom_call.1} parent=15 // pred_fallthru
          _
      $region16: #{tpu_custom_call.1} parent=5 // pred_fallthru
        _
      %p118 = scmp.le.s32.totalorder 1, %s10
      %p119 = scmp.lt.s32.totalorder %s10, 5
      %p120 = pnand %p118, %p119
      %p121 = pneg %p120
      // Predicated region
      $region21: #{tpu_custom_call.1} parent=5 // pred_check
        _
      $region22: #{tpu_custom_call.1} parent=5 // pred_check_branch
        %123 = sbr.rel (%p120) target = $region24
      $region23: #{tpu_custom_call.1} parent=5 // pred_region
        %s124 = ssub.s32 %s10, 1
        %s125 = sand.u32 %s37, 1
        %s126 = scalar_lea.sflag [#allocation4], %s125
        %s127 = sand.u32 %s37, 1
        %s128 = smul.addr %s127, 64
        %s129 = scalar_lea.vmem [#allocation3], %s128
        // Predicated region
        $region25: #{tpu_custom_call.1} parent=23 // pred_check
          %p130 = pneg %p50
        $region26: #{tpu_custom_call.1} parent=23 // pred_check_branch
          %132 = sbr.rel (%p130) target = $region28
        $region27: #{tpu_custom_call.1} parent=23 // pred_region
          %133 = dma.done %s126, 1024
        $region28: #{tpu_custom_call.1} parent=23 // pred_fallthru
          _
        %s134 = sand.u32 %s37, 1
        %s135 = scalar_lea.sflag [#allocation4], %s134
        %s136 = sand.u32 %s37, 1
        %s137 = smul.addr %s136, 64
        %s138 = scalar_lea.vmem [#allocation3], %s137
        %p139 = pneg %p50
        %p140 = pneg %p47
        %p141 = pneg %p76
        %p142 = pneg %p73
        %s143 = smul.u32 16, %s19
        %p144 = scmp.lt.s32.totalorder %s143, 31
        %s145 = scalar_select %p144, %s143, 31
        %s146 = smul.addr %s145, 8
        %s147 = scalar_lea.vmem %s1, %s146
        %s148 = smul.u32 16, %s19
        %s149 = smul.u32 16, %s19
        %p150 = scmp.lt.s32.totalorder %s149, 31
        %s151 = scalar_select %p150, %s149, 31
        %s152 = smul.addr %s151, 8
        %s153 = scalar_lea.vmem %s1, %s152
        %s154 = smul.u32 16, %s19
        %p155 = scmp.eq.s32.totalorder %s20, 0
        // Predicated region
        $region29: #{tpu_custom_call.1} parent=23 // pred_check
          %p156 = pneg %p155
        $region30: #{tpu_custom_call.1} parent=23 // pred_check_branch
          %158 = sbr.rel (%p156) target = $region32
        $region31: #{tpu_custom_call.1} parent=23 // pred_region
          %vm159 = vcmask 7168
          %160 = vst.msk [vmem:[#allocation2] sm:$0xff] %vm159, 0.0
          %161 = vst.msk [vmem:[#allocation2 + $0x8] sm:$0xff] %vm159, 0.0
          %162 = vst.msk [vmem:[#allocation2 + $0x10] sm:$0xff] %vm159, 0.0
          %163 = vst.msk [vmem:[#allocation2 + $0x18] sm:$0xff] %vm159, 0.0
          %164 = vst.msk [vmem:[#allocation2 + $0x20] sm:$0xff] %vm159, 0.0
          %165 = vst.msk [vmem:[#allocation2 + $0x28] sm:$0xff] %vm159, 0.0
          %166 = vst.msk [vmem:[#allocation2 + $0x30] sm:$0xff] %vm159, 0.0
          %167 = vst.msk [vmem:[#allocation2 + $0x38] sm:$0xff] %vm159, 0.0
          %168 = vst.msk [vmem:[#allocation2 + $0x40] sm:$0xff] %vm159, 0.0
          %169 = vst.msk [vmem:[#allocation2 + $0x48] sm:$0xff] %vm159, 0.0
          %170 = vst.msk [vmem:[#allocation2 + $0x50] sm:$0xff] %vm159, 0.0
          %171 = vst.msk [vmem:[#allocation2 + $0x58] sm:$0xff] %vm159, 0.0
          %172 = vst.msk [vmem:[#allocation2 + $0x60] sm:$0xff] %vm159, 0.0
          %173 = vst.msk [vmem:[#allocation2 + $0x68] sm:$0xff] %vm159, 0.0
          %174 = vst.msk [vmem:[#allocation2 + $0x70] sm:$0xff] %vm159, 0.0
          %175 = vst.msk [vmem:[#allocation2 + $0x78] sm:$0xff] %vm159, 0.0
        $region32: #{tpu_custom_call.1} parent=23 // pred_fallthru
          _
        %v176 = vld [vmem:[#allocation2] sm:$0xff]
        %v177 = vld [vmem:[#allocation2 + $0x8] sm:$0xff]
        %v178 = vld [vmem:[#allocation2 + $0x10] sm:$0xff]
        %v179 = vld [vmem:[#allocation2 + $0x18] sm:$0xff]
        %v180 = vld [vmem:[#allocation2 + $0x20] sm:$0xff]
        %v181 = vld [vmem:[#allocation2 + $0x28] sm:$0xff]
        %v182 = vld [vmem:[#allocation2 + $0x30] sm:$0xff]
        %v183 = vld [vmem:[#allocation2 + $0x38] sm:$0xff]
        %v184 = vld [vmem:[#allocation2 + $0x40] sm:$0xff]
        %v185 = vld [vmem:[#allocation2 + $0x48] sm:$0xff]
        %v186 = vld [vmem:[#allocation2 + $0x50] sm:$0xff]
        %v187 = vld [vmem:[#allocation2 + $0x58] sm:$0xff]
        %v188 = vld [vmem:[#allocation2 + $0x60] sm:$0xff]
        %v189 = vld [vmem:[#allocation2 + $0x68] sm:$0xff]
        %v190 = vld [vmem:[#allocation2 + $0x70] sm:$0xff]
        %v191 = vld [vmem:[#allocation2 + $0x78] sm:$0xff]
        %v192 = vld [vmem:[%s129] sm:$0xf]
        %v193 = vld [vmem:[%s129 + $0x4] sm:$0xf]
        %v194 = vld [vmem:[%s129 + $0x8] sm:$0xf]
        %v195 = vld [vmem:[%s129 + $0xc] sm:$0xf]
        %v196 = vld [vmem:[%s129 + $0x10] sm:$0xf]
        %v197 = vld [vmem:[%s129 + $0x14] sm:$0xf]
        %v198 = vld [vmem:[%s129 + $0x18] sm:$0xf]
        %v199 = vld [vmem:[%s129 + $0x1c] sm:$0xf]
        %v200 = vld [vmem:[%s129 + $0x20] sm:$0xf]
        %v201 = vld [vmem:[%s129 + $0x24] sm:$0xf]
        %v202 = vld [vmem:[%s129 + $0x28] sm:$0xf]
        %v203 = vld [vmem:[%s129 + $0x2c] sm:$0xf]
        %v204 = vld [vmem:[%s129 + $0x30] sm:$0xf]
        %v205 = vld [vmem:[%s129 + $0x34] sm:$0xf]
        %v206 = vld [vmem:[%s129 + $0x38] sm:$0xf]
        %v207 = vld [vmem:[%s129 + $0x3c] sm:$0xf]
        %v208 = vunpack.c.l.bf16 %v192
        %v209 = vunpack.c.l.bf16 %v193
        %v210 = vunpack.c.l.bf16 %v194
        %v211 = vunpack.c.l.bf16 %v195
        %v212 = vunpack.c.l.bf16 %v196
        %v213 = vunpack.c.l.bf16 %v197
        %v214 = vunpack.c.l.bf16 %v198
        %v215 = vunpack.c.l.bf16 %v199
        %v216 = vunpack.c.l.bf16 %v200
        %v217 = vunpack.c.l.bf16 %v201
        %v218 = vunpack.c.l.bf16 %v202
        %v219 = vunpack.c.l.bf16 %v203
        %v220 = vunpack.c.l.bf16 %v204
        %v221 = vunpack.c.l.bf16 %v205
        %v222 = vunpack.c.l.bf16 %v206
        %v223 = vunpack.c.l.bf16 %v207
        %224 = vadd.xlane.f32.xlu0 %v208
        %v225 = vpop.xlane.xlu0 %224
        %226 = vadd.xlane.f32.xlu0 %v209
        %v227 = vpop.xlane.xlu0 %226
        %228 = vadd.xlane.f32.xlu0 %v210
        %v229 = vpop.xlane.xlu0 %228
        %230 = vadd.xlane.f32.xlu0 %v211
        %v231 = vpop.xlane.xlu0 %230
        %232 = vadd.xlane.f32.xlu0 %v212
        %v233 = vpop.xlane.xlu0 %232
        %234 = vadd.xlane.f32.xlu0 %v213
        %v235 = vpop.xlane.xlu0 %234
        %236 = vadd.xlane.f32.xlu0 %v214
        %v237 = vpop.xlane.xlu0 %236
        %238 = vadd.xlane.f32.xlu0 %v215
        %v239 = vpop.xlane.xlu0 %238
        %240 = vadd.xlane.f32.xlu0 %v216
        %v241 = vpop.xlane.xlu0 %240
        %242 = vadd.xlane.f32.xlu0 %v217
        %v243 = vpop.xlane.xlu0 %242
        %244 = vadd.xlane.f32.xlu0 %v218
        %v245 = vpop.xlane.xlu0 %244
        %246 = vadd.xlane.f32.xlu0 %v219
        %v247 = vpop.xlane.xlu0 %246
        %248 = vadd.xlane.f32.xlu0 %v220
        %v249 = vpop.xlane.xlu0 %248
        %250 = vadd.xlane.f32.xlu0 %v221
        %v251 = vpop.xlane.xlu0 %250
        %252 = vadd.xlane.f32.xlu0 %v222
        %v253 = vpop.xlane.xlu0 %252
        %254 = vadd.xlane.f32.xlu0 %v223
        %v255 = vpop.xlane.xlu0 %254
        %v256 = vadd.f32 %v176, %v225
        %v257 = vadd.f32 %v177, %v227
        %v258 = vadd.f32 %v178, %v229
        %v259 = vadd.f32 %v179, %v231
        %v260 = vadd.f32 %v180, %v233
        %v261 = vadd.f32 %v181, %v235
        %v262 = vadd.f32 %v182, %v237
        %v263 = vadd.f32 %v183, %v239
        %v264 = vadd.f32 %v184, %v241
        %v265 = vadd.f32 %v185, %v243
        %v266 = vadd.f32 %v186, %v245
        %v267 = vadd.f32 %v187, %v247
        %v268 = vadd.f32 %v188, %v249
        %v269 = vadd.f32 %v189, %v251
        %v270 = vadd.f32 %v190, %v253
        %v271 = vadd.f32 %v191, %v255
        %vm272 = vcmask 7168
        %273 = vst.msk [vmem:[#allocation2] sm:$0xff] %vm272, %v256
        %274 = vst.msk [vmem:[#allocation2 + $0x8] sm:$0xff] %vm272, %v257
        %275 = vst.msk [vmem:[#allocation2 + $0x10] sm:$0xff] %vm272, %v258
        %276 = vst.msk [vmem:[#allocation2 + $0x18] sm:$0xff] %vm272, %v259
        %277 = vst.msk [vmem:[#allocation2 + $0x20] sm:$0xff] %vm272, %v260
        %278 = vst.msk [vmem:[#allocation2 + $0x28] sm:$0xff] %vm272, %v261
        %279 = vst.msk [vmem:[#allocation2 + $0x30] sm:$0xff] %vm272, %v262
        %280 = vst.msk [vmem:[#allocation2 + $0x38] sm:$0xff] %vm272, %v263
        %281 = vst.msk [vmem:[#allocation2 + $0x40] sm:$0xff] %vm272, %v264
        %282 = vst.msk [vmem:[#allocation2 + $0x48] sm:$0xff] %vm272, %v265
        %283 = vst.msk [vmem:[#allocation2 + $0x50] sm:$0xff] %vm272, %v266
        %284 = vst.msk [vmem:[#allocation2 + $0x58] sm:$0xff] %vm272, %v267
        %285 = vst.msk [vmem:[#allocation2 + $0x60] sm:$0xff] %vm272, %v268
        %286 = vst.msk [vmem:[#allocation2 + $0x68] sm:$0xff] %vm272, %v269
        %287 = vst.msk [vmem:[#allocation2 + $0x70] sm:$0xff] %vm272, %v270
        %288 = vst.msk [vmem:[#allocation2 + $0x78] sm:$0xff] %vm272, %v271
        %p289 = scmp.eq.s32.totalorder %s20, 1
        // Predicated region
        $region33: #{tpu_custom_call.1} parent=23 // pred_check
          %p290 = pneg %p289
        $region34: #{tpu_custom_call.1} parent=23 // pred_check_branch
          %292 = sbr.rel (%p290) target = $region36
        $region35: #{tpu_custom_call.1} parent=23 // pred_region
          %v293 = vld [vmem:[#allocation2] sm:$0xff]
          %v294 = vld [vmem:[#allocation2 + $0x8] sm:$0xff]
          %v295 = vld [vmem:[#allocation2 + $0x10] sm:$0xff]
          %v296 = vld [vmem:[#allocation2 + $0x18] sm:$0xff]
          %v297 = vld [vmem:[#allocation2 + $0x20] sm:$0xff]
          %v298 = vld [vmem:[#allocation2 + $0x28] sm:$0xff]
          %v299 = vld [vmem:[#allocation2 + $0x30] sm:$0xff]
          %v300 = vld [vmem:[#allocation2 + $0x38] sm:$0xff]
          %v301 = vld [vmem:[#allocation2 + $0x40] sm:$0xff]
          %v302 = vld [vmem:[#allocation2 + $0x48] sm:$0xff]
          %v303 = vld [vmem:[#allocation2 + $0x50] sm:$0xff]
          %v304 = vld [vmem:[#allocation2 + $0x58] sm:$0xff]
          %v305 = vld [vmem:[#allocation2 + $0x60] sm:$0xff]
          %v306 = vld [vmem:[#allocation2 + $0x68] sm:$0xff]
          %v307 = vld [vmem:[#allocation2 + $0x70] sm:$0xff]
          %v308 = vld [vmem:[#allocation2 + $0x78] sm:$0xff]
          %v309 = vadd.f32 %v293, 1.0
          %v310 = vadd.f32 %v294, 1.0
          %v311 = vadd.f32 %v295, 1.0
          %v312 = vadd.f32 %v296, 1.0
          %v313 = vadd.f32 %v297, 1.0
          %v314 = vadd.f32 %v298, 1.0
          %v315 = vadd.f32 %v299, 1.0
          %v316 = vadd.f32 %v300, 1.0
          %v317 = vadd.f32 %v301, 1.0
          %v318 = vadd.f32 %v302, 1.0
          %v319 = vadd.f32 %v303, 1.0
          %v320 = vadd.f32 %v304, 1.0
          %v321 = vadd.f32 %v305, 1.0
          %v322 = vadd.f32 %v306, 1.0
          %v323 = vadd.f32 %v307, 1.0
          %v324 = vadd.f32 %v308, 1.0
          %v325 = vrsqrt.pop %v309
          %v326 = vrsqrt.pop %v310
          %v327 = vrsqrt.pop %v311
          %v328 = vrsqrt.pop %v312
          %v329 = vrsqrt.pop %v313
          %v330 = vrsqrt.pop %v314
          %v331 = vrsqrt.pop %v315
          %v332 = vrsqrt.pop %v316
          %v333 = vrsqrt.pop %v317
          %v334 = vrsqrt.pop %v318
          %v335 = vrsqrt.pop %v319
          %v336 = vrsqrt.pop %v320
          %v337 = vrsqrt.pop %v321
          %v338 = vrsqrt.pop %v322
          %v339 = vrsqrt.pop %v323
          %v340 = vrsqrt.pop %v324
          %341 = vst.msk [vmem:[%s153] sm:$0xff] %vm272, %v325
          %342 = vst.msk [vmem:[%s153 + $0x8] sm:$0xff] %vm272, %v326
          %343 = vst.msk [vmem:[%s153 + $0x10] sm:$0xff] %vm272, %v327
          %344 = vst.msk [vmem:[%s153 + $0x18] sm:$0xff] %vm272, %v328
          %345 = vst.msk [vmem:[%s153 + $0x20] sm:$0xff] %vm272, %v329
          %346 = vst.msk [vmem:[%s153 + $0x28] sm:$0xff] %vm272, %v330
          %347 = vst.msk [vmem:[%s153 + $0x30] sm:$0xff] %vm272, %v331
          %348 = vst.msk [vmem:[%s153 + $0x38] sm:$0xff] %vm272, %v332
          %349 = vst.msk [vmem:[%s153 + $0x40] sm:$0xff] %vm272, %v333
          %350 = vst.msk [vmem:[%s153 + $0x48] sm:$0xff] %vm272, %v334
          %351 = vst.msk [vmem:[%s153 + $0x50] sm:$0xff] %vm272, %v335
          %352 = vst.msk [vmem:[%s153 + $0x58] sm:$0xff] %vm272, %v336
          %353 = vst.msk [vmem:[%s153 + $0x60] sm:$0xff] %vm272, %v337
          %354 = vst.msk [vmem:[%s153 + $0x68] sm:$0xff] %vm272, %v338
          %355 = vst.msk [vmem:[%s153 + $0x70] sm:$0xff] %vm272, %v339
          %356 = vst.msk [vmem:[%s153 + $0x78] sm:$0xff] %vm272, %v340
        $region36: #{tpu_custom_call.1} parent=23 // pred_fallthru
          _
        %s357 = smul.u32 16, %s19
        %p358 = scmp.lt.s32.totalorder %s357, 31
        %s359 = scalar_select %p358, %s357, 31
        %s360 = smul.addr %s359, 8
        %s361 = scalar_lea.vmem %s1, %s360
        // Predicated region
        $region37: #{tpu_custom_call.1} parent=23 // pred_check
          %p362 = pneg %p73
        $region38: #{tpu_custom_call.1} parent=23 // pred_check_branch
          %364 = sbr.rel (%p362) target = $region40
        $region39: #{tpu_custom_call.1} parent=23 // pred_region
          %s365 = smul.u32 16, %s19
        $region40: #{tpu_custom_call.1} parent=23 // pred_fallthru
          _
      $region24: #{tpu_custom_call.1} parent=5 // pred_fallthru
        _
      %p366 = scmp.le.s32.totalorder 2, %s10
      // Predicated region
      $region41: #{tpu_custom_call.1} parent=5 // pred_check
        %p367 = pneg %p366
      $region42: #{tpu_custom_call.1} parent=5 // pred_check_branch
        %369 = sbr.rel (%p367) target = $region44
      $region43: #{tpu_custom_call.1} parent=5 // pred_region
        %s370 = ssub.s32 %s10, 2
        // Predicated region
        $region45: #{tpu_custom_call.1} parent=43 // pred_check
          %p371 = pneg %p79
        $region46: #{tpu_custom_call.1} parent=43 // pred_check_branch
          %373 = sbr.rel (%p371) target = $region48
        $region47: #{tpu_custom_call.1} parent=43 // pred_region
          %s374 = smul.u32 16, %s21
          %p375 = scmp.lt.s32.totalorder %s374, 31
          %s376 = scalar_select %p375, %s374, 31
          %s377 = smul.addr %s376, 8
          %s378 = scalar_lea.vmem %s1, %s377
        $region48: #{tpu_custom_call.1} parent=43 // pred_fallthru
          _
      $region44: #{tpu_custom_call.1} parent=5 // pred_fallthru
        _
    $region6: #{tpu_custom_call.1} parent=1 // loop_footer
      %s14 = sadd.s32 1, %s10
    $region7: #{tpu_custom_call.1} parent=1 // loop_footer_branch
      %9 = sbr.rel target = $region3
    $region8: #{tpu_custom_call.1} parent=1 // loop_exit
      _
    %379 = vsyncpa [#allocation4], 1
    %s380 = scalar_lea.sflag [#allocation4], 1
    %381 = vsyncpa %s380, 1

</llo_original>
